<compile_context>
chip_gen: v6e
topology: v6e:2x2x1
jax: 0.10.0
libtpu: 0.0.40
codegen_flags: <defaults>
</compile_context>

<pallas_src>
import functools

import jax
import jax.numpy as jnp
from jax import lax
from jax.experimental import pallas as pl
from jax.experimental.pallas import tpu as pltpu

_LANE = 128          # TPU lane width
_FUSED_CHUNK = 512   # lane chunk (multiple of 128) for in-kernel N loops


# ---------------------------------------------------------------------------
# Per-generation VMEM budget
# ---------------------------------------------------------------------------
def _vmem_limit_bytes():
    cap = None
    try:
        cap = int(pltpu.get_tpu_info().vmem_capacity_bytes)
    except Exception:
        cap = None
    if not cap or cap <= 0:
        cap = 64 << 20          # conservative default: v7x-sized VMEM
    # Request ~75% of physical VMEM, leaving headroom for Mosaic internal
    # scratch: ~48 MiB on v7x (64 MiB), ~96 MiB on v5e/v6e (128 MiB).
    return (cap * 3) // 4


# ---------------------------------------------------------------------------
# Fused kernel: pool over N + excitation MLP + gated blend on resident tiles
# ---------------------------------------------------------------------------
def _fused_kernel(x1_ref, x2_ref, w1_ref, w2_ref, o_ref, *, n_chunk):
    bt, c, n = x1_ref.shape
    n_full = n // n_chunk
    rem = n - n_full * n_chunk

    def _chunk_sum(lo, size, acc):
        a = x1_ref[:, :, pl.ds(lo, size)].astype(jnp.float32)
        b = x2_ref[:, :, pl.ds(lo, size)].astype(jnp.float32)
        return acc + jnp.sum(a + b, axis=-1)

    # --- squeeze: sum over N, chunked so f32 temporaries stay chunk-sized ---
    acc = jnp.zeros((bt, c), jnp.float32)
    if n_full > 0:
        def body(i, acc):
            lo = pl.multiple_of(i * n_chunk, n_chunk)
            return _chunk_sum(lo, n_chunk, acc)
        acc = lax.fori_loop(0, n_full, body, acc)
    if rem > 0:
        acc = _chunk_sum(n_full * n_chunk, rem, acc)

    # --- excitation MLP (FLOP-trivial, runs once per tile) ---
    pooled = acc * (1.0 / float(n))
    h = jnp.maximum(
        jnp.dot(pooled, w1_ref[...], preferred_element_type=jnp.float32), 0.0)
    gate = jax.nn.sigmoid(
        jnp.dot(h, w2_ref[...], preferred_element_type=jnp.float32))
    gate = gate[:, :, None]                                 # (bt, c, 1) f32

    # --- blend: out = x2 + a*(x1 - x2), in f32, chunked over N ---
    def _chunk_blend(lo, size):
        a = x1_ref[:, :, pl.ds(lo, size)].astype(jnp.float32)
        b = x2_ref[:, :, pl.ds(lo, size)].astype(jnp.float32)
        o_ref[:, :, pl.ds(lo, size)] = (b + gate * (a - b)).astype(o_ref.dtype)

    if n_full > 0:
        def body2(i, carry):
            lo = pl.multiple_of(i * n_chunk, n_chunk)
            _chunk_blend(lo, n_chunk)
            return carry
        lax.fori_loop(0, n_full, body2, 0)
    if rem > 0:
        _chunk_blend(n_full * n_chunk, rem)


# ---------------------------------------------------------------------------
# Two-pass fallback kernels
# ---------------------------------------------------------------------------
def _pool_kernel_small(x1_ref, x2_ref, psum_ref):
    # N < 128: a single full-extent N block per (b, c) tile.
    fea = x1_ref[...].astype(jnp.float32) + x2_ref[...].astype(jnp.float32)
    psum_ref[...] = jnp.sum(fea, axis=-1)


def _pool_kernel(x1_ref, x2_ref, psum_ref, acc_ref, *, n_total, n_tile):
    """Partial sums of (x1 + x2) over N.

    N is the innermost ("arbitrary") grid axis.  acc_ref is a lane-parallel
    (bt, ct, 128) f32 accumulator: the hot loop is pure VPU adds over 128-lane
    slices; the single XLU lane-reduce happens only at the finalize step.
    The tail block (N % n_tile != 0) is masked with an iota compare.
    """
    ni = pl.program_id(2)
    n_last = pl.num_programs(2) - 1

    @pl.when(ni == 0)
    def _():
        acc_ref[...] = jnp.zeros_like(acc_ref)

    n_slices = n_tile // _LANE
    base = ni * n_tile
    has_tail = (n_total % n_tile) != 0          # static

    def body(s, carry):
        lo = pl.multiple_of(s * _LANE, _LANE)
        a = x1_ref[:, :, pl.ds(lo, _LANE)].astype(jnp.float32)
        b = x2_ref[:, :, pl.ds(lo, _LANE)].astype(jnp.float32)
        fea = a + b
        if has_tail:
            # Mask lanes past the true N (only emitted for tail-bearing shapes;
            # one vcmp+vsel per slice, hidden under the HBM-bound stream).
            col = lax.broadcasted_iota(jnp.int32, fea.shape, 2)
            fea = jnp.where(base + lo + col < n_total, fea, 0.0)
        acc_ref[...] += fea
        return carry

    lax.fori_loop(0, n_slices, body, 0, unroll=(n_slices <= 8))

    @pl.when(ni == n_last)
    def _():
        psum_ref[...] = jnp.sum(acc_ref[...], axis=-1)


def _blend_kernel(attn_ref, x1_ref, x2_ref, o_ref):
    # out = a*x1 + (1-a)*x2 == x2 + a*(x1 - x2); blend in f32, cast the result.
    gate = attn_ref[...][:, :, None]            # (bt, ct, 1) f32
    a = x1_ref[...].astype(jnp.float32)
    b = x2_ref[...].astype(jnp.float32)
    o_ref[...] = (b + gate * (a - b)).astype(o_ref.dtype)


# ---------------------------------------------------------------------------
# Wrappers
# ---------------------------------------------------------------------------
def _fused_call(x1, x2, w1, w2, b_tile, vmem_limit):
    B, C, N = x1.shape
    itemsize = x1.dtype.itemsize
    cr = w1.shape[1]
    grid = (B // b_tile,)
    return pl.pallas_call(
        functools.partial(_fused_kernel, n_chunk=_FUSED_CHUNK),
        out_shape=jax.ShapeDtypeStruct((B, C, N), x1.dtype),
        grid_spec=pltpu.PrefetchScalarGridSpec(
            num_scalar_prefetch=0,
            grid=grid,
            in_specs=[
                pl.BlockSpec((b_tile, C, N), lambda bi: (bi, 0, 0)),
                pl.BlockSpec((b_tile, C, N), lambda bi: (bi, 0, 0)),
                pl.BlockSpec(w1.shape, lambda bi: (0, 0)),
                pl.BlockSpec(w2.shape, lambda bi: (0, 0)),
            ],
            out_specs=pl.BlockSpec((b_tile, C, N), lambda bi: (bi, 0, 0)),
        ),
        compiler_params=pltpu.CompilerParams(
            dimension_semantics=("parallel",),
            vmem_limit_bytes=int(vmem_limit),
        ),
        cost_estimate=pl.CostEstimate(
            flops=5 * B * C * N + 4 * B * C * cr,
            transcendentals=B * C,
            bytes_accessed=(3 * B * C * N * itemsize
                            + (w1.size + w2.size) * w1.dtype.itemsize),
        ),
    )(x1, x2, w1, w2)


def _two_pass_call(x1, x2, w1, w2, vmem_limit, tile_budget):
    B, C, N = x1.shape
    itemsize = x1.dtype.itemsize

    # Byte-budget-driven tile selection.  Stage-2 streaming is the binding
    # footprint: 3 streams (x1, x2, out) x 2 pipeline buffers per tile.
    # (b_tile, c_tile) 2-D blocks require b_tile % 8 == 0 (or full B) and
    # c_tile % 128 == 0 (or full C).
    b_tile = 8 if B % 8 == 0 else B
    c_tile = C
    if N < _LANE:
        n_tile = N                               # single full-extent N block
    else:
        nt_fit = (tile_budget // (6 * b_tile * C * itemsize)) // _LANE * _LANE
        n_aligned = N if N % _LANE == 0 else (N // _LANE) * _LANE
        if nt_fit >= _LANE:
            n_tile = int(min(nt_fit, n_aligned))
        else:
            # Even a 128-lane slab of full C does not fit: tile C as well
            # (possible only when C is a multiple of 128).
            n_tile = _LANE
            if C % _LANE == 0:
                ct_fit = (tile_budget
                          // (6 * b_tile * _LANE * itemsize)) // _LANE * _LANE
                c_tile = int(max(_LANE, min(ct_fit, C)))

    n_b = pl.cdiv(B, b_tile)
    n_c = pl.cdiv(C, c_tile)
    n_n = pl.cdiv(N, n_tile)

    # ---- pass 1: pooled sums (B, C) in f32 ----
    pool_cost = pl.CostEstimate(
        flops=2 * B * C * N, transcendentals=0,
        bytes_accessed=2 * B * C * N * itemsize + B * C * 4)
    if N < _LANE:
        psum = pl.pallas_call(
            _pool_kernel_small,
            out_shape=jax.ShapeDtypeStruct((B, C), jnp.float32),
            grid_spec=pltpu.PrefetchScalarGridSpec(
                num_scalar_prefetch=0,
                grid=(n_b, n_c),
                in_specs=[
                    pl.BlockSpec((b_tile, c_tile, N), lambda bi, ci: (bi, ci, 0)),
                    pl.BlockSpec((b_tile, c_tile, N), lambda bi, ci: (bi, ci, 0)),
                ],
                out_specs=pl.BlockSpec((b_tile, c_tile), lambda bi, ci: (bi, ci)),
            ),
            compiler_params=pltpu.CompilerParams(
                dimension_semantics=("parallel", "parallel"),
                vmem_limit_bytes=int(vmem_limit),
            ),
            cost_estimate=pool_cost,
        )(x1, x2)
    else:
        psum = pl.pallas_call(
            functools.partial(_pool_kernel, n_total=N, n_tile=n_tile),
            out_shape=jax.ShapeDtypeStruct((B, C), jnp.float32),
            grid_spec=pltpu.PrefetchScalarGridSpec(
                num_scalar_prefetch=0,
                grid=(n_b, n_c, n_n),
                in_specs=[
                    pl.BlockSpec((b_tile, c_tile, n_tile),
                                 lambda bi, ci, ni: (bi, ci, ni)),
                    pl.BlockSpec((b_tile, c_tile, n_tile),
                                 lambda bi, ci, ni: (bi, ci, ni)),
                ],
                out_specs=pl.BlockSpec((b_tile, c_tile),
                                       lambda bi, ci, ni: (bi, ci)),
                scratch_shapes=[pltpu.VMEM((b_tile, c_tile, _LANE), jnp.float32)],
            ),
            compiler_params=pltpu.CompilerParams(
                dimension_semantics=("parallel", "parallel", "arbitrary"),
                vmem_limit_bytes=int(vmem_limit),
            ),
            cost_estimate=pool_cost,
        )(x1, x2)

    # Excitation MLP once over the full batch, in plain JAX: keeps w1/w2 out
    # of the reduction's VMEM budget and avoids many under-filled MXU matmuls.
    pooled = psum * (1.0 / float(N))
    h = jnp.maximum(pooled @ w1.astype(jnp.float32), 0.0)
    attn = jax.nn.sigmoid(h @ w2.astype(jnp.float32))          # (B, C) f32

    # ---- pass 2: streaming gated blend (all axes parallel) ----
    # NOTE: if tiles end up small, pipeline_mode=pl.Buffered(3) on x1/x2 specs
    # is an optional sweep; prefer larger tiles first (VMEM is scarce on v7x).
    out = pl.pallas_call(
        _blend_kernel,
        out_shape=jax.ShapeDtypeStruct((B, C, N), x1.dtype),
        grid_spec=pltpu.PrefetchScalarGridSpec(
            num_scalar_prefetch=0,
            grid=(n_b, n_c, n_n),
            in_specs=[
                pl.BlockSpec((b_tile, c_tile), lambda bi, ci, ni: (bi, ci)),
                pl.BlockSpec((b_tile, c_tile, n_tile),
                             lambda bi, ci, ni: (bi, ci, ni)),
                pl.BlockSpec((b_tile, c_tile, n_tile),
                             lambda bi, ci, ni: (bi, ci, ni)),
            ],
            out_specs=pl.BlockSpec((b_tile, c_tile, n_tile),
                                   lambda bi, ci, ni: (bi, ci, ni)),
        ),
        compiler_params=pltpu.CompilerParams(
            dimension_semantics=("parallel", "parallel", "parallel"),
            vmem_limit_bytes=int(vmem_limit),
        ),
        cost_estimate=pl.CostEstimate(
            flops=3 * B * C * N, transcendentals=0,
            bytes_accessed=3 * B * C * N * itemsize + B * C * 4,
        ),
    )(attn, x1, x2)
    return out


def adaptive_layer(x1, x2, w1, w2, *, force_two_pass=False):
    """x1, x2: (B, C, N); w1: (C, C//r); w2: (C//r, C). Returns (B, C, N)."""
    B, C, N = x1.shape
    itemsize = x1.dtype.itemsize
    weight_bytes = (w1.size + w2.size) * w1.dtype.itemsize

    vmem_limit = _vmem_limit_bytes()
    # ~60% of the requested VMEM goes to streamed/resident data tiles; the
    # rest covers double-buffering slack, weights, accumulators, temporaries.
    tile_budget = (vmem_limit * 3) // 5

    # Fused-path footprint per batch row: x1/x2/out tiles double-buffered (6x)
    # plus transient f32 chunk slabs and the gate row.
    chunk = min(N, _FUSED_CHUNK)
    fused_per_b = 6 * C * N * itemsize + 4 * C * chunk * 4 + C * 4
    fused_avail = tile_budget - weight_bytes - (1 << 20)

    if not force_two_pass and 0 < fused_per_b <= fused_avail:
        b_tile = int(min(B, fused_avail // fused_per_b))
        if B >= 2:
            # >= 2 grid blocks so both v7x TensorCores get work.
            b_tile = min(b_tile, B // 2)
        b_tile = max(1, b_tile)
        while B % b_tile:            # keep B blocks exact
            b_tile -= 1
        return _fused_call(x1, x2, w1, w2, b_tile, vmem_limit)

    return _two_pass_call(x1, x2, w1, w2, vmem_limit, tile_budget)


# ---------------------------------------------------------------------------
# Pure-JAX reference mirroring the PyTorch forward
# ---------------------------------------------------------------------------
def reference(x1, x2, w1, w2):
    fea = x1 + x2
    pooled = jnp.mean(fea, axis=-1)                 # (B, C)
    h = jnp.maximum(pooled @ w1, 0.0)               # (B, C//r)
    attn = jax.nn.sigmoid(h @ w2)                   # (B, C)
    a = attn[:, :, None]
    return a * x1 + (1.0 - a) * x2


if __name__ == "__main__":
    def make_inputs(B, C, N, r, key):
        k1, k2, k3, k4 = jax.random.split(key, 4)
        x1 = jax.random.normal(k1, (B, C, N), dtype=jnp.float32)
        x2 = jax.random.normal(k2, (B, C, N), dtype=jnp.float32)
        # PyTorch Linear(C, C//r) weight is (C//r, C); stored pre-transposed.
        w1 = jax.random.normal(k3, (C, C // r), dtype=jnp.float32) * 0.1
        w2 = jax.random.normal(k4, (C // r, C), dtype=jnp.float32) * 0.1
        return x1, x2, w1, w2

    # 1) Preferred fused single-pass path (small shapes -> VMEM-resident).
    args = make_inputs(2, 32, 16, 4, jax.random.PRNGKey(0))
    out = adaptive_layer(*args)
    jax.block_until_ready(out)
    ref = reference(*args)
    assert out.shape == (2, 32, 16)
    assert jnp.allclose(out, ref, atol=1e-5, rtol=1e-5), "fused path mismatch"

    # 2) Two-pass fallback: chunked pooling with a masked N tail (N % 128 != 0).
    args2 = make_inputs(2, 32, 608, 4, jax.random.PRNGKey(1))
    out2 = adaptive_layer(*args2, force_two_pass=True)
    jax.block_until_ready(out2)
    ref2 = reference(*args2)
    assert jnp.allclose(out2, ref2, atol=1e-5, rtol=1e-5), "two-pass mismatch"

    # 3) Two-pass fallback: small-N single-block pooling kernel.
    out3 = adaptive_layer(*args, force_two_pass=True)
    jax.block_until_ready(out3)
    assert jnp.allclose(out3, ref, atol=1e-5, rtol=1e-5), "small-N two-pass mismatch"

    print("KERNEL_OK")
</pallas_src>

<mosaic_0001>
module attributes {stable_mosaic.version = 11 : i64} {
  func.func @_fused_kernel(%arg0: i32, %arg1: memref<1x32x16xf32, #tpu.memory_space<vmem>>, %arg2: memref<1x32x16xf32, #tpu.memory_space<vmem>>, %arg3: memref<32x8xf32, #tpu.memory_space<vmem>>, %arg4: memref<8x32xf32, #tpu.memory_space<vmem>>, %arg5: memref<1x32x16xf32, #tpu.memory_space<vmem>>) attributes {dimension_semantics = [#tpu.dimension_semantics<parallel>], iteration_bounds = array<i64: 2>, scalar_prefetch = 0 : i64, scratch_operands = 0 : i64, tpu.core_type = #tpu.core_type<tc>, window_params = [{transform_indices = @transform_0, window_bounds = array<i64: 1, 32, 16>}, {transform_indices = @transform_1, window_bounds = array<i64: 1, 32, 16>}, {pipeline_mode = #tpu.pipeline_mode<synchronous>, transform_indices = @transform_2, window_bounds = array<i64: 32, 8>}, {pipeline_mode = #tpu.pipeline_mode<synchronous>, transform_indices = @transform_3, window_bounds = array<i64: 8, 32>}, {transform_indices = @transform_4, window_bounds = array<i64: 1, 32, 16>}]} {
    %cst = arith.constant 0.000000e+00 : f32
    %0 = vector.broadcast %cst : f32 to vector<1x32xf32>
    %c0 = arith.constant 0 : index
    %c0_0 = arith.constant 0 : index
    %c0_1 = arith.constant 0 : index
    %1 = vector.load %arg1[%c0, %c0_0, %c0_1] : memref<1x32x16xf32, #tpu.memory_space<vmem>>, vector<1x32x16xf32>
    %c0_2 = arith.constant 0 : index
    %c0_3 = arith.constant 0 : index
    %c0_4 = arith.constant 0 : index
    %2 = vector.load %arg2[%c0_2, %c0_3, %c0_4] : memref<1x32x16xf32, #tpu.memory_space<vmem>>, vector<1x32x16xf32>
    %3 = arith.addf %1, %2 : vector<1x32x16xf32>
    %cst_5 = arith.constant dense<0.000000e+00> : vector<1x32xf32>
    %4 = vector.multi_reduction <add>, %3, %cst_5 [2] : vector<1x32x16xf32> to vector<1x32xf32>
    %5 = arith.addf %0, %4 : vector<1x32xf32>
    %cst_6 = arith.constant 6.250000e-02 : f32
    %6 = vector.broadcast %cst_6 : f32 to vector<1x32xf32>
    %7 = arith.mulf %5, %6 : vector<1x32xf32>
    %c0_7 = arith.constant 0 : index
    %c0_8 = arith.constant 0 : index
    %8 = vector.load %arg3[%c0_7, %c0_8] : memref<32x8xf32, #tpu.memory_space<vmem>>, vector<32x8xf32>
    %cst_9 = arith.constant dense<0.000000e+00> : vector<1x8xf32>
    %9 = tpu.matmul %7, %8, %cst_9 {dimension_numbers = #tpu.dot_dimension_numbers<[1], [0], [0], [1], [0, 0, 1, 1], [], []>} : vector<1x32xf32>, vector<32x8xf32>, vector<1x8xf32> -> vector<1x8xf32>
    %cst_10 = arith.constant 0.000000e+00 : f32
    %10 = vector.broadcast %cst_10 : f32 to vector<1x8xf32>
    %11 = arith.maximumf %9, %10 : vector<1x8xf32>
    %c0_11 = arith.constant 0 : index
    %c0_12 = arith.constant 0 : index
    %12 = vector.load %arg4[%c0_11, %c0_12] : memref<8x32xf32, #tpu.memory_space<vmem>>, vector<8x32xf32>
    %cst_13 = arith.constant dense<0.000000e+00> : vector<1x32xf32>
    %13 = tpu.matmul %11, %12, %cst_13 {dimension_numbers = #tpu.dot_dimension_numbers<[1], [0], [0], [1], [0, 0, 1, 1], [], []>} : vector<1x8xf32>, vector<8x32xf32>, vector<1x32xf32> -> vector<1x32xf32>
    %14 = arith.negf %13 : vector<1x32xf32>
    %15 = math.exp %14 : vector<1x32xf32>
    %cst_14 = arith.constant 1.000000e+00 : f32
    %16 = vector.broadcast %cst_14 : f32 to vector<1x32xf32>
    %17 = arith.addf %16, %15 : vector<1x32xf32>
    %18 = arith.divf %16, %17 : vector<1x32xf32>
    %19 = vector.shape_cast %18 : vector<1x32xf32> to vector<1x32x1xf32>
    %c0_15 = arith.constant 0 : index
    %c0_16 = arith.constant 0 : index
    %c0_17 = arith.constant 0 : index
    %20 = vector.load %arg1[%c0_15, %c0_16, %c0_17] : memref<1x32x16xf32, #tpu.memory_space<vmem>>, vector<1x32x16xf32>
    %c0_18 = arith.constant 0 : index
    %c0_19 = arith.constant 0 : index
    %c0_20 = arith.constant 0 : index
    %21 = vector.load %arg2[%c0_18, %c0_19, %c0_20] : memref<1x32x16xf32, #tpu.memory_space<vmem>>, vector<1x32x16xf32>
    %22 = arith.subf %20, %21 : vector<1x32x16xf32>
    %23 = vector.broadcast %19 : vector<1x32x1xf32> to vector<1x32x16xf32>
    %24 = arith.mulf %23, %22 : vector<1x32x16xf32>
    %25 = arith.addf %21, %24 : vector<1x32x16xf32>
    %c0_21 = arith.constant 0 : index
    %c0_22 = arith.constant 0 : index
    %c0_23 = arith.constant 0 : index
    %26 = vector.load %arg5[%c0_21, %c0_22, %c0_23] : memref<1x32x16xf32, #tpu.memory_space<vmem>>, vector<1x32x16xf32>
    tpu.vector_store %arg5[%c0_21, %c0_22, %c0_23], %25 {strides = array<i32>} : memref<1x32x16xf32, #tpu.memory_space<vmem>>, vector<1x32x16xf32>,
    return
  }
  func.func @transform_0(%arg0: i32) -> (i32, i32, i32) {
    %c0_i32 = arith.constant 0 : i32
    %c0_i32_0 = arith.constant 0 : i32
    %c0_i32_1 = arith.constant 0 : i32
    return %arg0, %c0_i32, %c0_i32_0 : i32, i32, i32
  }
  func.func @transform_1(%arg0: i32) -> (i32, i32, i32) {
    %c0_i32 = arith.constant 0 : i32
    %c0_i32_0 = arith.constant 0 : i32
    %c0_i32_1 = arith.constant 0 : i32
    return %arg0, %c0_i32, %c0_i32_0 : i32, i32, i32
  }
  func.func @transform_2(%arg0: i32) -> (i32, i32) {
    %c0_i32 = arith.constant 0 : i32
    %c0_i32_0 = arith.constant 0 : i32
    %c0_i32_1 = arith.constant 0 : i32
    return %c0_i32, %c0_i32_0 : i32, i32
  }
  func.func @transform_3(%arg0: i32) -> (i32, i32) {
    %c0_i32 = arith.constant 0 : i32
    %c0_i32_0 = arith.constant 0 : i32
    %c0_i32_1 = arith.constant 0 : i32
    return %c0_i32, %c0_i32_0 : i32, i32
  }
  func.func @transform_4(%arg0: i32) -> (i32, i32, i32) {
    %c0_i32 = arith.constant 0 : i32
    %c0_i32_0 = arith.constant 0 : i32
    %c0_i32_1 = arith.constant 0 : i32
    return %arg0, %c0_i32, %c0_i32_0 : i32, i32, i32
  }
}

</mosaic_0001>

<llo_original>
// kernel: tpu_custom_call.1
$region0: #{tpu_custom_call.1}
  #allocation0 [shape = 'u32[]', space=smem, size = 0x4, offset = 0x4, fixed_abs, tag = 'smem constant byte address 0x4 - core index']
  #allocation1 [shape = 'u32[144,128]{1,0:T(1,128)}', space=vmem, size = 0x12000, scoped, tag = 'internal scratch']
  %s0 = inlined_call_operand.vmem [shape: f32[2,32,16], index: 0, kind: input, shape index: {}]
  %s1 = inlined_call_operand.vmem [shape: f32[2,32,16], index: 1, kind: input, shape index: {}]
  %s2 = inlined_call_operand.vmem [shape: f32[32,8], index: 2, kind: input, shape index: {}]
  %s3 = inlined_call_operand.vmem [shape: f32[8,32], index: 3, kind: input, shape index: {}]
  %s4 = inlined_call_operand.vmem [shape: f32[2,32,16], index: 4, kind: output, shape index: {}]
  %s5 = sld [smem:[#allocation0]]
  $region49: #{tpu_custom_call.1} parent=0
    _
  %s7 = ssub.s32 1, %s5
  %s8 = scalar_select 0, %s7, %s5
  loop: start=0, step=1, limit=4
  $region2: #{tpu_custom_call.1} parent=0 // loop_pre_header
    _
  $region3: #{tpu_custom_call.1} parent=0 // loop_header
    %s10 = sphi 0, %s14
    %p11 = scmp.ge.s32.totalorder %s10, 4
    %s20 = sphi 0, %s22
    %s23 = sphi 0, %s20
    %s24 = sphi 0, %s23
    %s40 = sphi 0, %s24
    %s46 = sphi 0, %s48
    %s49 = sphi 0, %s46
    %s50 = sphi 0, %s49
    %s66 = sphi 0, %s50
    %s70 = sphi 0, %s70
    %s72 = sphi 0, %s70
    %s73 = sphi 0, %s72
    %s87 = sphi 0, %s73
    %s91 = sphi 0, %s91
    %s93 = sphi 0, %s91
    %s94 = sphi 0, %s93
    %s108 = sphi 0, %s94
    %s114 = sphi 0, %s116
    %s117 = sphi 0, %s114
    %s118 = sphi 0, %s117
    %s134 = sphi 0, %s118
  $region4: #{tpu_custom_call.1} parent=0 // loop_header_branch
    %13 = sbr.rel (%p11) target = $region8
  $region5: #{tpu_custom_call.1} parent=0 // loop_body
    %s15 = ssub.s32 %s10, 1
    %s16 = ssub.s32 %s10, 2
    %s17 = sadd.s32 %s10, 1
    %s18 = ssub.s32 %s10, %s17
    %p19 = scmp.eq.s32.totalorder %s18, 0
    %s21 = sadd.s32 %s20, 1
    %s22 = scalar_select %p19, %s20, %s21
    %p25 = pneg %p19
    %p26 = scmp.eq.s32.totalorder %s10, 1
    %p27 = por %p25, %p26
    %p28 = scmp.ne.s32.totalorder %s20, %s23
    %p29 = scmp.eq.s32.totalorder %s10, 0
    %p30 = por %p28, %p29
    %p31 = scmp.ne.s32.totalorder %s20, %s23
    %p32 = scmp.eq.s32.totalorder %s15, 1
    %p33 = por %p31, %p32
    %p34 = scmp.ne.s32.totalorder %s23, %s24
    %p35 = scmp.eq.s32.totalorder %s15, 0
    %p36 = por %p34, %p35
    %p37 = scmp.ne.s32.totalorder %s23, %s24
    %p38 = scmp.eq.s32.totalorder %s16, 1
    %p39 = por %p37, %p38
    %p41 = scmp.ne.s32.totalorder %s24, %s40
    %p42 = scmp.eq.s32.totalorder %s16, 0
    %p43 = por %p41, %p42
    %s44 = ssub.s32 %s10, %s17
    %p45 = scmp.eq.s32.totalorder %s44, 0
    %s47 = sadd.s32 %s46, 1
    %s48 = scalar_select %p45, %s46, %s47
    %p51 = pneg %p45
    %p52 = scmp.eq.s32.totalorder %s10, 1
    %p53 = por %p51, %p52
    %p54 = scmp.ne.s32.totalorder %s46, %s49
    %p55 = scmp.eq.s32.totalorder %s10, 0
    %p56 = por %p54, %p55
    %p57 = scmp.ne.s32.totalorder %s46, %s49
    %p58 = scmp.eq.s32.totalorder %s15, 1
    %p59 = por %p57, %p58
    %p60 = scmp.ne.s32.totalorder %s49, %s50
    %p61 = scmp.eq.s32.totalorder %s15, 0
    %p62 = por %p60, %p61
    %p63 = scmp.ne.s32.totalorder %s49, %s50
    %p64 = scmp.eq.s32.totalorder %s16, 1
    %p65 = por %p63, %p64
    %p67 = scmp.ne.s32.totalorder %s50, %s66
    %p68 = scmp.eq.s32.totalorder %s16, 0
    %p69 = por %p67, %p68
    %s71 = sadd.s32 %s70, 1
    %p74 = scmp.eq.s32.totalorder %s10, 1
    %p75 = scmp.ne.s32.totalorder %s70, %s72
    %p76 = scmp.eq.s32.totalorder %s10, 0
    %p77 = por %p75, %p76
    %p78 = scmp.ne.s32.totalorder %s70, %s72
    %p79 = scmp.eq.s32.totalorder %s15, 1
    %p80 = por %p78, %p79
    %p81 = scmp.ne.s32.totalorder %s72, %s73
    %p82 = scmp.eq.s32.totalorder %s15, 0
    %p83 = por %p81, %p82
    %p84 = scmp.ne.s32.totalorder %s72, %s73
    %p85 = scmp.eq.s32.totalorder %s16, 1
    %p86 = por %p84, %p85
    %p88 = scmp.ne.s32.totalorder %s73, %s87
    %p89 = scmp.eq.s32.totalorder %s16, 0
    %p90 = por %p88, %p89
    %s92 = sadd.s32 %s91, 1
    %p95 = scmp.eq.s32.totalorder %s10, 1
    %p96 = scmp.ne.s32.totalorder %s91, %s93
    %p97 = scmp.eq.s32.totalorder %s10, 0
    %p98 = por %p96, %p97
    %p99 = scmp.ne.s32.totalorder %s91, %s93
    %p100 = scmp.eq.s32.totalorder %s15, 1
    %p101 = por %p99, %p100
    %p102 = scmp.ne.s32.totalorder %s93, %s94
    %p103 = scmp.eq.s32.totalorder %s15, 0
    %p104 = por %p102, %p103
    %p105 = scmp.ne.s32.totalorder %s93, %s94
    %p106 = scmp.eq.s32.totalorder %s16, 1
    %p107 = por %p105, %p106
    %p109 = scmp.ne.s32.totalorder %s94, %s108
    %p110 = scmp.eq.s32.totalorder %s16, 0
    %p111 = por %p109, %p110
    %s112 = ssub.s32 %s10, %s17
    %p113 = scmp.eq.s32.totalorder %s112, 0
    %s115 = sadd.s32 %s114, 1
    %s116 = scalar_select %p113, %s114, %s115
    %p119 = pneg %p113
    %p120 = scmp.eq.s32.totalorder %s10, 1
    %p121 = por %p119, %p120
    %p122 = scmp.ne.s32.totalorder %s114, %s117
    %p123 = scmp.eq.s32.totalorder %s10, 0
    %p124 = por %p122, %p123
    %p125 = scmp.ne.s32.totalorder %s114, %s117
    %p126 = scmp.eq.s32.totalorder %s15, 1
    %p127 = por %p125, %p126
    %p128 = scmp.ne.s32.totalorder %s117, %s118
    %p129 = scmp.eq.s32.totalorder %s15, 0
    %p130 = por %p128, %p129
    %p131 = scmp.ne.s32.totalorder %s117, %s118
    %p132 = scmp.eq.s32.totalorder %s16, 1
    %p133 = por %p131, %p132
    %p135 = scmp.ne.s32.totalorder %s118, %s134
    %p136 = scmp.eq.s32.totalorder %s16, 0
    %p137 = por %p135, %p136
    %p138 = scmp.le.s32.totalorder 1, %s10
    %p139 = scmp.lt.s32.totalorder %s10, 3
    %p140 = pnand %p138, %p139
    %p141 = pneg %p140
    // Predicated region
    $region9: #{tpu_custom_call.1} parent=5 // pred_check
      _
    $region10: #{tpu_custom_call.1} parent=5 // pred_check_branch
      %143 = sbr.rel (%p140) target = $region12
    $region11: #{tpu_custom_call.1} parent=5 // pred_region
      %s144 = ssub.s32 %s10, 1
      // Predicated region
      $region13: #{tpu_custom_call.1} parent=11 // pred_check
        %p145 = pneg %p83
      $region14: #{tpu_custom_call.1} parent=11 // pred_check_branch
        %147 = sbr.rel (%p145) target = $region16
      $region15: #{tpu_custom_call.1} parent=11 // pred_region
        _
      $region16: #{tpu_custom_call.1} parent=11 // pred_fallthru
        _
      // Predicated region
      $region17: #{tpu_custom_call.1} parent=11 // pred_check
        %p148 = pneg %p104
      $region18: #{tpu_custom_call.1} parent=11 // pred_check_branch
        %150 = sbr.rel (%p148) target = $region20
      $region19: #{tpu_custom_call.1} parent=11 // pred_region
        _
      $region20: #{tpu_custom_call.1} parent=11 // pred_fallthru
        _
    $region12: #{tpu_custom_call.1} parent=5 // pred_fallthru
      _
    %p151 = scmp.lt.s32.totalorder %s10, 2
    // Predicated region
    $region21: #{tpu_custom_call.1} parent=5 // pred_check
      %p152 = pneg %p151
    $region22: #{tpu_custom_call.1} parent=5 // pred_check_branch
      %154 = sbr.rel (%p152) target = $region24
    $region23: #{tpu_custom_call.1} parent=5 // pred_region
      // Predicated region
      $region25: #{tpu_custom_call.1} parent=23 // pred_check
        %p155 = pneg %p30
      $region26: #{tpu_custom_call.1} parent=23 // pred_check_branch
        %157 = sbr.rel (%p155) target = $region28
      $region27: #{tpu_custom_call.1} parent=23 // pred_region
        %p158 = scmp.lt.s32.totalorder %s10, 1
        %s159 = scalar_select %p158, %s10, 1
        %s160 = smul.addr %s159, 4
        %s161 = smul.addr %s160, 8
        %s162 = scalar_lea.vmem %s0, %s161
      $region28: #{tpu_custom_call.1} parent=23 // pred_fallthru
        _
      // Predicated region
      $region29: #{tpu_custom_call.1} parent=23 // pred_check
        %p163 = pneg %p56
      $region30: #{tpu_custom_call.1} parent=23 // pred_check_branch
        %165 = sbr.rel (%p163) target = $region32
      $region31: #{tpu_custom_call.1} parent=23 // pred_region
        %p166 = scmp.lt.s32.totalorder %s10, 1
        %s167 = scalar_select %p166, %s10, 1
        %s168 = smul.addr %s167, 4
        %s169 = smul.addr %s168, 8
        %s170 = scalar_lea.vmem %s1, %s169
      $region32: #{tpu_custom_call.1} parent=23 // pred_fallthru
        _
    $region24: #{tpu_custom_call.1} parent=5 // pred_fallthru
      _
    %p171 = scmp.le.s32.totalorder 1, %s10
    %p172 = scmp.lt.s32.totalorder %s10, 3
    %p173 = pnand %p171, %p172
    %p174 = pneg %p173
    // Predicated region
    $region33: #{tpu_custom_call.1} parent=5 // pred_check
      _
    $region34: #{tpu_custom_call.1} parent=5 // pred_check_branch
      %176 = sbr.rel (%p173) target = $region36
    $region35: #{tpu_custom_call.1} parent=5 // pred_region
      %s177 = ssub.s32 %s10, 1
      %p178 = scmp.lt.s32.totalorder %s15, 1
      %s179 = scalar_select %p178, %s15, 1
      %s180 = smul.addr %s179, 4
      %s181 = smul.addr %s180, 8
      %s182 = scalar_lea.vmem %s0, %s181
      %p183 = pneg %p36
      %p184 = pneg %p33
      %p185 = scmp.lt.s32.totalorder %s15, 1
      %s186 = scalar_select %p185, %s15, 1
      %s187 = smul.addr %s186, 4
      %s188 = smul.addr %s187, 8
      %s189 = scalar_lea.vmem %s1, %s188
      %p190 = pneg %p62
      %p191 = pneg %p59
      %p192 = pneg %p83
      %p193 = pneg %p80
      %p194 = pneg %p104
      %p195 = pneg %p101
      %p196 = pneg %p130
      %p197 = pneg %p127
      %p198 = scmp.lt.s32.totalorder %s15, 1
      %s199 = scalar_select %p198, %s15, 1
      %s200 = smul.addr %s199, 4
      %s201 = smul.addr %s200, 8
      %s202 = scalar_lea.vmem %s4, %s201
      %p203 = scmp.lt.s32.totalorder %s15, 1
      %s204 = scalar_select %p203, %s15, 1
      %s205 = smul.addr %s204, 4
      %s206 = smul.addr %s205, 8
      %s207 = scalar_lea.vmem %s0, %s206
      %p208 = scmp.lt.s32.totalorder %s15, 1
      %s209 = scalar_select %p208, %s15, 1
      %s210 = smul.addr %s209, 4
      %s211 = smul.addr %s210, 8
      %s212 = scalar_lea.vmem %s1, %s211
      %p213 = scmp.lt.s32.totalorder %s15, 1
      %s214 = scalar_select %p213, %s15, 1
      %s215 = smul.addr %s214, 4
      %s216 = smul.addr %s215, 8
      %s217 = scalar_lea.vmem %s4, %s216
      %v218 = vld [vmem:[%s207] sm:$0xff]
      %v219 = vld [vmem:[%s207 + $0x8] sm:$0xff]
      %v220 = vld [vmem:[%s207 + $0x10] sm:$0xff]
      %v221 = vld [vmem:[%s207 + $0x18] sm:$0xff]
      %v222 = vld [vmem:[%s212] sm:$0xff]
      %v223 = vld [vmem:[%s212 + $0x8] sm:$0xff]
      %v224 = vld [vmem:[%s212 + $0x10] sm:$0xff]
      %v225 = vld [vmem:[%s212 + $0x18] sm:$0xff]
      %v226 = vadd.f32 %v218, %v222
      %v227 = vadd.f32 %v219, %v223
      %v228 = vadd.f32 %v220, %v224
      %v229 = vadd.f32 %v221, %v225
      %vm230 = vcmask 130048
      %v231 = vsel %vm230, %v226, 0.0
      %232 = vadd.xlane.f32.xlu0 %v231
      %v233 = vpop.xlane.xlu0 %232
      %v234 = vsel %vm230, %v227, 0.0
      %235 = vadd.xlane.f32.xlu0 %v234
      %v236 = vpop.xlane.xlu0 %235
      %v237 = vsel %vm230, %v228, 0.0
      %238 = vadd.xlane.f32.xlu0 %v237
      %v239 = vpop.xlane.xlu0 %238
      %v240 = vsel %vm230, %v229, 0.0
      %241 = vadd.xlane.f32.xlu0 %v240
      %v242 = vpop.xlane.xlu0 %241
      %v243 = vadd.f32 %v233, 0.0
      %v244 = vadd.f32 %v236, 0.0
      %v245 = vadd.f32 %v239, 0.0
      %v246 = vadd.f32 %v242, 0.0
      %v247 = vmul.f32 %v243, 0.0625
      %v248 = vmul.f32 %v244, 0.0625
      %v249 = vmul.f32 %v245, 0.0625
      %v250 = vmul.f32 %v246, 0.0625
      %v251 = vld [vmem:[%s2] sm:$0xff]
      %v252 = vld [vmem:[%s2 + $0x8] sm:$0xff]
      %v253 = vld [vmem:[%s2 + $0x10] sm:$0xff]
      %v254 = vld [vmem:[%s2 + $0x18] sm:$0xff]
      %v259 = vlaneseq
      %v260 = vand.u32 %v259, 127
      %v261 = vlaneseq
      %v262 = vshrl.u32 %v261, 7
      %v263 = vsub.s32 %v260, %v262
      %v264 = vrot.slane %v247, %v263
      %v265 = vadd.s32 %v260, 4294967288
      %v266 = vlaneseq
      %v267 = vshrl.u32 %v266, 7
      %v268 = vsub.s32 %v265, %v267
      %v269 = vrot.slane %v248, %v268
      %vm270 = vcmask 130112
      %v271 = vsel %vm270, %v269, %v264
      %v272 = vadd.s32 %v260, 4294967280
      %v273 = vlaneseq
      %v274 = vshrl.u32 %v273, 7
      %v275 = vsub.s32 %v272, %v274
      %v276 = vrot.slane %v249, %v275
      %vm277 = vcmask 195712
      %v278 = vsel %vm277, %v276, %v271
      %v279 = vadd.s32 %v260, 4294967272
      %v280 = vlaneseq
      %v281 = vshrl.u32 %v280, 7
      %v282 = vsub.s32 %v279, %v281
      %v283 = vrot.slane %v250, %v282
      %vm284 = vcmask 261312
      %v285 = vsel %vm284, %v283, %v278
      %vm286 = vcmask 261120
      %v287 = vsel %vm286, %v285, 0
      %289 = vmatprep.subr.mxu0 0.0
      %290 = vmatpush1.msra.mxu0 0.0
      %291 = vmatprep.subr.mxu0 0.0
      %292 = vmatpush1.msra.mxu0 0.0
      %293 = vmatprep.subr.mxu0 0.0
      %294 = vmatpush1.msra.mxu0 0.0
      %295 = vmatprep.subr.mxu0 0.0
      %296 = vmatpush1.msra.mxu0 0.0
      %297 = vmatprep.subr.mxu0 0.0
      %298 = vmatpush1.msra.mxu0 0.0
      %299 = vmatprep.subr.mxu0 0.0
      %300 = vmatpush1.msra.mxu0 0.0
      %301 = vmatprep.subr.mxu0 0.0
      %302 = vmatpush1.msra.mxu0 0.0
      %303 = vmatprep.subr.mxu0 0.0
      %304 = vmatpush1.msra.mxu0 0.0
      %305 = vmatprep.subr.mxu0 0.0
      %306 = vmatpush1.msra.mxu0 0.0
      %307 = vmatprep.subr.mxu0 0.0
      %308 = vmatpush1.msra.mxu0 0.0
      %309 = vmatprep.subr.mxu0 0.0
      %310 = vmatpush1.msra.mxu0 0.0
      %311 = vmatprep.subr.mxu0 0.0
      %312 = vmatpush1.msra.mxu0 0.0
      %313 = vmatprep.subr.mxu0 0.0
      %314 = vmatpush1.msra.mxu0 %v254
      %315 = vmatprep.subr.mxu0 0.0
      %316 = vmatpush1.msra.mxu0 %v253
      %317 = vmatprep.subr.mxu0 0.0
      %318 = vmatpush1.msra.mxu0 %v252
      %319 = vmatprep.subr.mxu0 0.0
      %320 = vmatpush1.msra.mxu0 %v251
      %321 = vmatprep.subr.mxu0 0.0
      %322 = vmatpush2.msra.mxu0 0.0
      %323 = vmatprep.subr.mxu0 0.0
      %324 = vmatpush2.msra.mxu0 0.0
      %325 = vmatprep.subr.mxu0 0.0
      %326 = vmatpush2.msra.mxu0 0.0
      %327 = vmatprep.subr.mxu0 0.0
      %328 = vmatpush2.msra.mxu0 0.0
      %329 = vmatprep.subr.mxu0 0.0
      %330 = vmatpush2.msra.mxu0 0.0
      %331 = vmatprep.subr.mxu0 0.0
      %332 = vmatpush2.msra.mxu0 0.0
      %333 = vmatprep.subr.mxu0 0.0
      %334 = vmatpush2.msra.mxu0 0.0
      %335 = vmatprep.subr.mxu0 0.0
      %336 = vmatpush2.msra.mxu0 0.0
      %337 = vmatprep.subr.mxu0 0.0
      %338 = vmatpush2.msra.mxu0 0.0
      %339 = vmatprep.subr.mxu0 0.0
      %340 = vmatpush2.msra.mxu0 0.0
      %341 = vmatprep.subr.mxu0 0.0
      %342 = vmatpush2.msra.mxu0 0.0
      %343 = vmatprep.subr.mxu0 0.0
      %344 = vmatpush2.msra.mxu0 0.0
      %345 = vmatprep.subr.mxu0 0.0
      %346 = vmatpush2.msra.mxu0 0.0
      %347 = vmatprep.subr.mxu0 0.0
      %348 = vmatpush2.msra.mxu0 0.0
      %349 = vmatprep.subr.mxu0 0.0
      %350 = vmatpush2.msra.mxu0 0.0
      %351 = vmatprep.subr.mxu0 0.0
      %352 = vmatpush2.msra.mxu0 0.0
      %353 = vmatprep.mubr.f32.mxu0 0.0
      %354 = vmatmul.mubr.f32.gmra.mxu0 %v287
      %v355 = vpop.f32.mrf.mxu0
      %v356 = vadd.f32 0.0, %v355
      %v357 = vpop.f32.mrf.mxu0
      %358 = vdwg.mxu0
      %v359 = vmax.f32 %v356, 0.0
      %v360 = vld [vmem:[%s3] sm:$0xff]
      %vm361 = vcmask 64512
      %v363 = vsel %vm361, %v359, 0
      %365 = vmatprep.subr.mxu0 0.0
      %366 = vmatpush1.msra.mxu0 0.0
      %367 = vmatprep.subr.mxu0 0.0
      %368 = vmatpush1.msra.mxu0 0.0
      %369 = vmatprep.subr.mxu0 0.0
      %370 = vmatpush1.msra.mxu0 0.0
      %371 = vmatprep.subr.mxu0 0.0
      %372 = vmatpush1.msra.mxu0 0.0
      %373 = vmatprep.subr.mxu0 0.0
      %374 = vmatpush1.msra.mxu0 0.0
      %375 = vmatprep.subr.mxu0 0.0
      %376 = vmatpush1.msra.mxu0 0.0
      %377 = vmatprep.subr.mxu0 0.0
      %378 = vmatpush1.msra.mxu0 0.0
      %379 = vmatprep.subr.mxu0 0.0
      %380 = vmatpush1.msra.mxu0 0.0
      %381 = vmatprep.subr.mxu0 0.0
      %382 = vmatpush1.msra.mxu0 0.0
      %383 = vmatprep.subr.mxu0 0.0
      %384 = vmatpush1.msra.mxu0 0.0
      %385 = vmatprep.subr.mxu0 0.0
      %386 = vmatpush1.msra.mxu0 0.0
      %387 = vmatprep.subr.mxu0 0.0
      %388 = vmatpush1.msra.mxu0 0.0
      %389 = vmatprep.subr.mxu0 0.0
      %390 = vmatpush1.msra.mxu0 0.0
      %391 = vmatprep.subr.mxu0 0.0
      %392 = vmatpush1.msra.mxu0 0.0
      %393 = vmatprep.subr.mxu0 0.0
      %394 = vmatpush1.msra.mxu0 0.0
      %395 = vmatprep.subr.mxu0 0.0
      %396 = vmatpush1.msra.mxu0 %v360
      %397 = vmatprep.subr.mxu0 0.0
      %398 = vmatpush2.msra.mxu0 0.0
      %399 = vmatprep.subr.mxu0 0.0
      %400 = vmatpush2.msra.mxu0 0.0
      %401 = vmatprep.subr.mxu0 0.0
      %402 = vmatpush2.msra.mxu0 0.0
      %403 = vmatprep.subr.mxu0 0.0
      %404 = vmatpush2.msra.mxu0 0.0
      %405 = vmatprep.subr.mxu0 0.0
      %406 = vmatpush2.msra.mxu0 0.0
      %407 = vmatprep.subr.mxu0 0.0
      %408 = vmatpush2.msra.mxu0 0.0
      %409 = vmatprep.subr.mxu0 0.0
      %410 = vmatpush2.msra.mxu0 0.0
      %411 = vmatprep.subr.mxu0 0.0
      %412 = vmatpush2.msra.mxu0 0.0
      %413 = vmatprep.subr.mxu0 0.0
      %414 = vmatpush2.msra.mxu0 0.0
      %415 = vmatprep.subr.mxu0 0.0
      %416 = vmatpush2.msra.mxu0 0.0
      %417 = vmatprep.subr.mxu0 0.0
      %418 = vmatpush2.msra.mxu0 0.0
      %419 = vmatprep.subr.mxu0 0.0
      %420 = vmatpush2.msra.mxu0 0.0
      %421 = vmatprep.subr.mxu0 0.0
      %422 = vmatpush2.msra.mxu0 0.0
      %423 = vmatprep.subr.mxu0 0.0
      %424 = vmatpush2.msra.mxu0 0.0
      %425 = vmatprep.subr.mxu0 0.0
      %426 = vmatpush2.msra.mxu0 0.0
      %427 = vmatprep.subr.mxu0 0.0
      %428 = vmatpush2.msra.mxu0 0.0
      %429 = vmatprep.mubr.f32.mxu0 0.0
      %430 = vmatmul.mubr.f32.gmra.mxu0 %v363
      %v431 = vpop.f32.mrf.mxu0
      %v432 = vadd.f32 0.0, %v431
      %v433 = vpop.f32.mrf.mxu0
      %434 = vdwg.mxu0
      %v435 = vxor.u32 %v432, 2147483648
      %v436 = vmul.f32 %v435, 1.442695
      %v437 = vpow.pop %v436
      %v438 = vadd.f32 %v437, 1.0
      %v439 = vrcp.pop %v438
      %v440 = vmul.f32 1.0, %v439
      %v441 = vlaneseq
      %v442 = vshrl.u32 %v441, 7
      %v443 = vsub.s32 0, %v442
      %v444 = vrot.slane %v440, %v443
      %446 = vbcast.lane.b32.xlu0 %v444, 256
      %v447 = vpop.permute.xlu0 %446
      %s449 = sor.u32 256, 8
      %450 = vbcast.lane.b32.xlu0 %v444, %s449
      %v451 = vpop.permute.xlu0 %450
      %s453 = sor.u32 256, 16
      %454 = vbcast.lane.b32.xlu0 %v444, %s453
      %v455 = vpop.permute.xlu0 %454
      %s457 = sor.u32 256, 24
      %458 = vbcast.lane.b32.xlu0 %v444, %s457
      %v459 = vpop.permute.xlu0 %458
      %v460 = vsub.f32 %v218, %v222
      %v461 = vsub.f32 %v219, %v223
      %v462 = vsub.f32 %v220, %v224
      %v463 = vsub.f32 %v221, %v225
      %v464 = vmul.f32 %v447, %v460
      %v465 = vmul.f32 %v451, %v461
      %v466 = vmul.f32 %v455, %v462
      %v467 = vmul.f32 %v459, %v463
      %v468 = vadd.f32 %v222, %v464
      %v469 = vadd.f32 %v223, %v465
      %v470 = vadd.f32 %v224, %v466
      %v471 = vadd.f32 %v225, %v467
      %472 = vst.msk [vmem:[%s217] sm:$0xff] %vm230, %v468
      %473 = vst.msk [vmem:[%s217 + $0x8] sm:$0xff] %vm230, %v469
      %474 = vst.msk [vmem:[%s217 + $0x10] sm:$0xff] %vm230, %v470
      %475 = vst.msk [vmem:[%s217 + $0x18] sm:$0xff] %vm230, %v471
      %p476 = scmp.lt.s32.totalorder %s15, 1
      %s477 = scalar_select %p476, %s15, 1
      %s478 = smul.addr %s477, 4
      %s479 = smul.addr %s478, 8
      %s480 = scalar_lea.vmem %s4, %s479
      // Predicated region
      $region37: #{tpu_custom_call.1} parent=35 // pred_check
        %p481 = pneg %p127
      $region38: #{tpu_custom_call.1} parent=35 // pred_check_branch
        %483 = sbr.rel (%p481) target = $region40
      $region39: #{tpu_custom_call.1} parent=35 // pred_region
        _
      $region40: #{tpu_custom_call.1} parent=35 // pred_fallthru
        _
    $region36: #{tpu_custom_call.1} parent=5 // pred_fallthru
      _
    %p484 = scmp.le.s32.totalorder 2, %s10
    // Predicated region
    $region41: #{tpu_custom_call.1} parent=5 // pred_check
      %p485 = pneg %p484
    $region42: #{tpu_custom_call.1} parent=5 // pred_check_branch
      %487 = sbr.rel (%p485) target = $region44
    $region43: #{tpu_custom_call.1} parent=5 // pred_region
      %s488 = ssub.s32 %s10, 2
      // Predicated region
      $region45: #{tpu_custom_call.1} parent=43 // pred_check
        %p489 = pneg %p133
      $region46: #{tpu_custom_call.1} parent=43 // pred_check_branch
        %491 = sbr.rel (%p489) target = $region48
      $region47: #{tpu_custom_call.1} parent=43 // pred_region
        %p492 = scmp.lt.s32.totalorder %s16, 1
        %s493 = scalar_select %p492, %s16, 1
        %s494 = smul.addr %s493, 4
        %s495 = smul.addr %s494, 8
        %s496 = scalar_lea.vmem %s4, %s495
      $region48: #{tpu_custom_call.1} parent=43 // pred_fallthru
        _
    $region44: #{tpu_custom_call.1} parent=5 // pred_fallthru
      _
  $region6: #{tpu_custom_call.1} parent=0 // loop_footer
    %s14 = sadd.s32 1, %s10
  $region7: #{tpu_custom_call.1} parent=0 // loop_footer_branch
    %9 = sbr.rel target = $region3
  $region8: #{tpu_custom_call.1} parent=0 // loop_exit
    _

</llo_original>
